<compile_context>
chip_gen: v6e
topology: v6e:2x2x1
jax: 0.10.0
libtpu: 0.0.40
codegen_flags: <defaults>
</compile_context>

<pallas_src>
import functools

import jax
import jax.numpy as jnp
from jax import lax
from jax.experimental import pallas as pl
from jax.experimental.pallas import tpu as pltpu


def _round_up(x, m):
    return ((x + m - 1) // m) * m


def _vmem_capacity_bytes():
    try:
        info = pltpu.get_tpu_info()
        cap = int(getattr(info, "vmem_capacity_bytes", 0))
        if cap > 0:
            return cap
    except Exception:
        pass
    return 64 * 1024 * 1024  # conservative default (v7x physical VMEM)


def _derive_tile_n(n, c, pred_itemsize, vmem_cap):
    """Largest 128-multiple lane tile whose kernel buffers fit well inside VMEM.

    Per-lane bytes ~= double-buffered pred + target input blocks plus f32
    compute temporaries (class dim padded to 8 sublanes)."""
    del n
    c8 = _round_up(max(c, 1), 8)
    per_lane = (
        2 * c8 * pred_itemsize   # pred block, double-buffered
        + 2 * 8 * 4              # target (1, T) i32 block (sublane-padded), double-buffered
        + 6 * c8 * 4             # f32 (C, T) temporaries (z, exp(z), masked selects, ...)
        + 6 * 8 * 4              # f32 (1, T) row temporaries (denom, pt, ce, focal, ...)
    )
    budget = int(vmem_cap * 0.45)            # headroom below the scoped limit
    tile = (budget // per_lane // 128) * 128
    tile = max(tile, 128)
    tile = min(tile, 1 << 19)                # sanity cap
    return tile


def _focal_loss_kernel(pred_ref, target_ref, alpha_ref, out_ref, *, n, tile_n, gamma):
    # pred_ref:   (C, T) logits (original dtype; cast to f32 in-kernel)
    # target_ref: (1, T) i32 class indices
    # alpha_ref:  (C, 1) f32 per-class weights
    # out_ref:    (1, 8, 128) f32; whole block filled with this tile's partial sum
    pid = pl.program_id(0)

    logits = pred_ref[...].astype(jnp.float32)                          # (C, T)

    # Numerically stable log-softmax pieces along the class (sublane) axis.
    m = jnp.max(logits, axis=0, keepdims=True)                          # (1, T)
    z = logits - m                                                      # (C, T)
    ez = jnp.exp(z)                                                     # (C, T) single EUP pass
    denom = jnp.sum(ez, axis=0, keepdims=True)                          # (1, T)

    # One-hot gather of the target class (VPU select + sublane reduce).
    class_ids = lax.broadcasted_iota(jnp.int32, logits.shape, 0)        # (C, T)
    onehot = class_ids == target_ref[...]                               # (C, T)
    z_t = jnp.sum(jnp.where(onehot, z, 0.0), axis=0, keepdims=True)     # (1, T)
    ez_t = jnp.sum(jnp.where(onehot, ez, 0.0), axis=0, keepdims=True)   # (1, T)
    alpha_t = jnp.sum(jnp.where(onehot, alpha_ref[...], 0.0),
                      axis=0, keepdims=True)                            # (1, T)

    ce_loss = jnp.log(denom) - z_t        # = -log_softmax[target] >= 0
    pt = ez_t / denom                     # reuse exp(z); no second exp pass
    omp = jnp.clip(1.0 - pt, 0.0, 1.0)    # guard tiny negative from rounding

    if isinstance(gamma, int) and gamma >= 0:
        pw = jnp.ones_like(omp)
        for _ in range(gamma):            # static unroll: VPU multiplies only
            pw = pw * omp
    else:
        pw = jnp.power(omp, jnp.float32(gamma))

    focal = alpha_t * pw * ce_loss                                      # (1, T)

    # Mask the out-of-range lanes of the (possibly ragged) last tile.
    col = lax.broadcasted_iota(jnp.int32, focal.shape, 1)
    valid = (pid * tile_n + col) < n
    focal = jnp.where(valid, focal, 0.0)

    out_ref[...] = jnp.zeros_like(out_ref) + jnp.sum(focal)


def multiclass_focal_loss(pred, target, alpha, *, gamma=2, reduction="mean",
                          tile_n=None, class_major=False):
    """pred: (N, C) float logits (any float dtype), or (C, N) if class_major=True.
    target: (N,) int class indices.  alpha: (C,) per-class weights.
    Matches MultiClassFocalLossWithAlpha.forward for reduction in {'mean','sum'}."""
    if class_major:
        # Preferred producer layout: avoids the transpose HBM pass over pred.
        c, n = pred.shape
        pred_t = pred
    else:
        n, c = pred.shape
        # TODO(synk): producers that can emit class-major (C, N) logits should pass
        # class_major=True; this transpose costs one extra HBM read+write of pred.
        pred_t = pred.T

    alpha_col = jnp.asarray(alpha, jnp.float32).reshape(c, 1)
    target_row = jnp.asarray(target, jnp.int32).reshape(1, n)

    vmem_cap = _vmem_capacity_bytes()
    itemsize = jnp.dtype(pred_t.dtype).itemsize
    if tile_n is None:
        tile_n = _derive_tile_n(n, c, itemsize, vmem_cap)
    # Keep the lane tile a multiple of 128 and never larger than the batch so
    # block_shape never exceeds the array extent; ragged last tiles are masked
    # in-kernel instead of padded in the wrapper.
    if n < 128:
        tile_n = n
    else:
        tile_n = min(max(128, (int(tile_n) // 128) * 128), (n // 128) * 128)
    num_tiles = (n + tile_n - 1) // tile_n

    kernel = functools.partial(_focal_loss_kernel, n=n, tile_n=tile_n, gamma=gamma)

    partials = pl.pallas_call(
        kernel,
        out_shape=jax.ShapeDtypeStruct((num_tiles, 8, 128), jnp.float32),
        grid=(num_tiles,),
        in_specs=[
            pl.BlockSpec((c, tile_n), lambda i: (0, i)),   # pred   (C, T)
            pl.BlockSpec((1, tile_n), lambda i: (0, i)),   # target (1, T)
            pl.BlockSpec((c, 1), lambda i: (0, 0)),        # alpha  (constant)
        ],
        out_specs=pl.BlockSpec((1, 8, 128), lambda i: (i, 0, 0)),
        compiler_params=pltpu.CompilerParams(
            dimension_semantics=("parallel",),             # no carried state -> both TCs on v7x
            vmem_limit_bytes=int(vmem_cap * 0.85),
        ),
    )(pred_t, target_row, alpha_col)

    total = jnp.sum(partials[:, 0, 0])
    if reduction == "mean":
        return total / n
    if reduction == "sum":
        return total
    # TODO(synk): reduction='none' (per-sample loss vector output) not wired to the kernel path.
    raise NotImplementedError("reduction must be 'mean' or 'sum'")


def _reference(pred, target, alpha, gamma=2):
    # pure-JAX reference mirroring the PyTorch forward
    alpha_t = jnp.asarray(alpha, jnp.float32)[target]
    log_softmax = jax.nn.log_softmax(pred.astype(jnp.float32), axis=1)
    logpt = jnp.take_along_axis(log_softmax, target.reshape(-1, 1), axis=1).reshape(-1)
    ce = -logpt
    pt = jnp.exp(logpt)
    return jnp.mean(alpha_t * (1.0 - pt) ** gamma * ce)


if __name__ == "__main__":
    key = jax.random.PRNGKey(0)
    k1, k2, k3, k4 = jax.random.split(key, 4)

    # Case 1: module-default shapes (binary classification, small batch).
    N, C = 8, 2
    alpha = [0.3, 0.7]  # module default __init__ parameters
    pred = jax.random.normal(k1, (N, C), dtype=jnp.float32)
    target = jax.random.randint(k2, (N,), 0, C, dtype=jnp.int32)

    loss = multiclass_focal_loss(pred, target, alpha)
    jax.block_until_ready(loss)
    ref = _reference(pred, target, alpha)
    assert jnp.allclose(loss, ref, atol=1e-5, rtol=1e-5), (loss, ref)

    # Case 2: ragged batch over multiple parallel grid tiles (masked last tile).
    N2, C2 = 300, 4
    alpha2 = [0.1, 0.2, 0.3, 0.4]
    pred2 = jax.random.normal(k3, (N2, C2), dtype=jnp.float32)
    target2 = jax.random.randint(k4, (N2,), 0, C2, dtype=jnp.int32)

    loss2 = multiclass_focal_loss(pred2, target2, alpha2, tile_n=128)
    jax.block_until_ready(loss2)
    ref2 = _reference(pred2, target2, alpha2)
    assert jnp.allclose(loss2, ref2, atol=1e-5, rtol=1e-5), (loss2, ref2)

    # Case 3: bf16 logits (no wrapper upcast; cast happens in-kernel) with the
    # class-major producer layout (no transpose pass inside the wrapper).
    pred3 = pred2.astype(jnp.bfloat16)
    loss3 = multiclass_focal_loss(pred3.T, target2, alpha2, class_major=True)
    jax.block_until_ready(loss3)
    ref3 = _reference(pred3.astype(jnp.float32), target2, alpha2)
    assert jnp.allclose(loss3, ref3, atol=1e-5, rtol=1e-5), (loss3, ref3)

    print("KERNEL_OK")
</pallas_src>

<mosaic_0001>
module attributes {stable_mosaic.version = 11 : i64} {
  func.func @_focal_loss_kernel(%arg0: i32, %arg1: memref<2x8xf32, #tpu.memory_space<vmem>>, %arg2: memref<1x8xi32, #tpu.memory_space<vmem>>, %arg3: memref<2x1xf32, #tpu.memory_space<vmem>>, %arg4: memref<1x8x128xf32, #tpu.memory_space<vmem>>) attributes {dimension_semantics = [#tpu.dimension_semantics<parallel>], iteration_bounds = array<i64: 1>, scalar_prefetch = 0 : i64, scratch_operands = 0 : i64, tpu.core_type = #tpu.core_type<tc>, window_params = [{transform_indices = @transform_0, window_bounds = array<i64: 2, 8>}, {transform_indices = @transform_1, window_bounds = array<i64: 1, 8>}, {pipeline_mode = #tpu.pipeline_mode<synchronous>, transform_indices = @transform_2, window_bounds = array<i64: 2, 1>}, {transform_indices = @transform_3, window_bounds = array<i64: 1, 8, 128>}]} {
    %c0 = arith.constant 0 : index
    %c0_0 = arith.constant 0 : index
    %0 = vector.load %arg1[%c0, %c0_0] : memref<2x8xf32, #tpu.memory_space<vmem>>, vector<2x8xf32>
    %cst = arith.constant dense<0xFF800000> : vector<8xf32>
    %1 = vector.multi_reduction <maximumf>, %0, %cst [0] : vector<2x8xf32> to vector<8xf32>
    %2 = vector.shape_cast %1 : vector<8xf32> to vector<1x8xf32>
    %3 = vector.broadcast %2 : vector<1x8xf32> to vector<2x8xf32>
    %4 = arith.subf %0, %3 : vector<2x8xf32>
    %5 = math.exp %4 : vector<2x8xf32>
    %cst_1 = arith.constant dense<0.000000e+00> : vector<8xf32>
    %6 = vector.multi_reduction <add>, %5, %cst_1 [0] : vector<2x8xf32> to vector<8xf32>
    %7 = vector.shape_cast %6 : vector<8xf32> to vector<1x8xf32>
    %8 = tpu.iota {dimensions = array<i32: 0>} : vector<2x8xi32>
    %c0_2 = arith.constant 0 : index
    %c0_3 = arith.constant 0 : index
    %9 = vector.load %arg2[%c0_2, %c0_3] : memref<1x8xi32, #tpu.memory_space<vmem>>, vector<1x8xi32>
    %10 = vector.broadcast %9 : vector<1x8xi32> to vector<2x8xi32>
    %11 = arith.cmpi eq, %8, %10 : vector<2x8xi32>
    %cst_4 = arith.constant 0.000000e+00 : f32
    %12 = vector.broadcast %cst_4 : f32 to vector<2x8xf32>
    %13 = arith.select %11, %4, %12 : vector<2x8xi1>, vector<2x8xf32>
    %cst_5 = arith.constant dense<0.000000e+00> : vector<8xf32>
    %14 = vector.multi_reduction <add>, %13, %cst_5 [0] : vector<2x8xf32> to vector<8xf32>
    %15 = vector.shape_cast %14 : vector<8xf32> to vector<1x8xf32>
    %cst_6 = arith.constant 0.000000e+00 : f32
    %16 = vector.broadcast %cst_6 : f32 to vector<2x8xf32>
    %17 = arith.select %11, %5, %16 : vector<2x8xi1>, vector<2x8xf32>
    %cst_7 = arith.constant dense<0.000000e+00> : vector<8xf32>
    %18 = vector.multi_reduction <add>, %17, %cst_7 [0] : vector<2x8xf32> to vector<8xf32>
    %19 = vector.shape_cast %18 : vector<8xf32> to vector<1x8xf32>
    %c0_8 = arith.constant 0 : index
    %c0_9 = arith.constant 0 : index
    %20 = vector.load %arg3[%c0_8, %c0_9] : memref<2x1xf32, #tpu.memory_space<vmem>>, vector<2x1xf32>
    %cst_10 = arith.constant 0.000000e+00 : f32
    %21 = vector.shape_cast %20 : vector<2x1xf32> to vector<2x1xf32>
    %22 = vector.broadcast %21 : vector<2x1xf32> to vector<2x8xf32>
    %23 = vector.broadcast %cst_10 : f32 to vector<2x8xf32>
    %24 = arith.select %11, %22, %23 : vector<2x8xi1>, vector<2x8xf32>
    %cst_11 = arith.constant dense<0.000000e+00> : vector<8xf32>
    %25 = vector.multi_reduction <add>, %24, %cst_11 [0] : vector<2x8xf32> to vector<8xf32>
    %26 = vector.shape_cast %25 : vector<8xf32> to vector<1x8xf32>
    %27 = math.log %7 : vector<1x8xf32>
    %28 = arith.subf %27, %15 : vector<1x8xf32>
    %29 = arith.divf %19, %7 : vector<1x8xf32>
    %cst_12 = arith.constant 1.000000e+00 : f32
    %30 = vector.broadcast %cst_12 : f32 to vector<1x8xf32>
    %31 = arith.subf %30, %29 : vector<1x8xf32>
    %cst_13 = arith.constant 0.000000e+00 : f32
    %cst_14 = arith.constant 1.000000e+00 : f32
    %32 = vector.broadcast %cst_13 : f32 to vector<1x8xf32>
    %33 = arith.maximumf %32, %31 : vector<1x8xf32>
    %34 = vector.broadcast %cst_14 : f32 to vector<1x8xf32>
    %35 = arith.minimumf %34, %33 : vector<1x8xf32>
    %cst_15 = arith.constant 1.000000e+00 : f32
    %36 = vector.broadcast %cst_15 : f32 to vector<1x8xf32>
    %37 = arith.mulf %36, %35 : vector<1x8xf32>
    %38 = arith.mulf %37, %35 : vector<1x8xf32>
    %39 = arith.mulf %26, %38 : vector<1x8xf32>
    %40 = arith.mulf %39, %28 : vector<1x8xf32>
    %41 = tpu.iota {dimensions = array<i32: 1>} : vector<1x8xi32>
    %c8_i32 = arith.constant 8 : i32
    %42 = arith.muli %arg0, %c8_i32 : i32
    %43 = vector.broadcast %42 : i32 to vector<1x8xi32>
    %44 = arith.addi %43, %41 : vector<1x8xi32>
    %c8_i32_16 = arith.constant 8 : i32
    %45 = vector.broadcast %c8_i32_16 : i32 to vector<1x8xi32>
    %46 = arith.cmpi slt, %44, %45 : vector<1x8xi32>
    %cst_17 = arith.constant 0.000000e+00 : f32
    %47 = vector.broadcast %cst_17 : f32 to vector<1x8xf32>
    %48 = arith.select %46, %40, %47 : vector<1x8xi1>, vector<1x8xf32>
    %cst_18 = arith.constant 0.000000e+00 : f32
    %49 = vector.broadcast %cst_18 : f32 to vector<1x8x128xf32>
    %50 = vector.shape_cast %48 : vector<1x8xf32> to vector<1x1x8xf32>
    %cst_19 = arith.constant dense<0.000000e+00> : vector<1xf32>
    %51 = vector.multi_reduction <add>, %50, %cst_19 [1, 2] : vector<1x1x8xf32> to vector<1xf32>
    %52 = vector.shape_cast %51 : vector<1xf32> to vector<1x1x1xf32>
    %53 = vector.extract %52[0, 0, 0] : f32 from vector<1x1x1xf32>
    %54 = vector.broadcast %53 : f32 to vector<1x8x128xf32>
    %55 = arith.addf %49, %54 : vector<1x8x128xf32>
    %c0_20 = arith.constant 0 : index
    %c0_21 = arith.constant 0 : index
    %c0_22 = arith.constant 0 : index
    %56 = vector.load %arg4[%c0_20, %c0_21, %c0_22] : memref<1x8x128xf32, #tpu.memory_space<vmem>>, vector<1x8x128xf32>
    tpu.vector_store %arg4[%c0_20, %c0_21, %c0_22], %55 {strides = array<i32>} : memref<1x8x128xf32, #tpu.memory_space<vmem>>, vector<1x8x128xf32>,
    return
  }
  func.func @transform_0(%arg0: i32) -> (i32, i32) {
    %c0_i32 = arith.constant 0 : i32
    %c0_i32_0 = arith.constant 0 : i32
    return %c0_i32, %arg0 : i32, i32
  }
  func.func @transform_1(%arg0: i32) -> (i32, i32) {
    %c0_i32 = arith.constant 0 : i32
    %c0_i32_0 = arith.constant 0 : i32
    return %c0_i32, %arg0 : i32, i32
  }
  func.func @transform_2(%arg0: i32) -> (i32, i32) {
    %c0_i32 = arith.constant 0 : i32
    %c0_i32_0 = arith.constant 0 : i32
    %c0_i32_1 = arith.constant 0 : i32
    return %c0_i32, %c0_i32_0 : i32, i32
  }
  func.func @transform_3(%arg0: i32) -> (i32, i32, i32) {
    %c0_i32 = arith.constant 0 : i32
    %c0_i32_0 = arith.constant 0 : i32
    %c0_i32_1 = arith.constant 0 : i32
    return %arg0, %c0_i32, %c0_i32_0 : i32, i32, i32
  }
}

</mosaic_0001>

<llo_original>
// kernel: tpu_custom_call.1
$region0: #{tpu_custom_call.1}
  #allocation0 [shape = 'u32[]', space=smem, size = 0x4, offset = 0x4, fixed_abs, tag = 'smem constant byte address 0x4 - core index']
  #allocation1 [shape = 'u32[144,128]{1,0:T(1,128)}', space=vmem, size = 0x12000, scoped, tag = 'internal scratch']
  %s0 = inlined_call_operand.vmem [shape: f32[2,8], index: 0, kind: input, shape index: {}]
  %s1 = inlined_call_operand.vmem [shape: s32[1,8], index: 1, kind: input, shape index: {}]
  %s2 = inlined_call_operand.vmem [shape: f32[2,1], index: 2, kind: input, shape index: {}]
  %s3 = inlined_call_operand.hbm [shape: f32[1,8,128], index: 3, kind: output, shape index: {}]
  %s4 = sld [smem:[#allocation0]]
  $region22: #{tpu_custom_call.1} parent=0
    _
  %s6 = ssub.s32 1, %s4
  %s7 = scalar_select 0, %s6, %s4
  $region1: #{tpu_custom_call.1} parent=0
    #allocation2 [shape = 'u8[4096]{0}', space=vmem, size = 0x1000, scoped, tag = 'output window, operand 0, single buffered']
    #allocation3 [shape = 's32[1]{0}', space=sflag, size = 0x4, scoped, tag = 'scoped memory for tpu_custom_call.1']
    %8 = vsyncpa [#allocation3], 0
    // Predicated region
    $region2: #{tpu_custom_call.1} parent=1 // pred_check
      _
    $region3: #{tpu_custom_call.1} parent=1 // pred_check_branch
      %10 = sbr.rel (0) target = $region5
    $region4: #{tpu_custom_call.1} parent=1 // pred_region
      _
    $region5: #{tpu_custom_call.1} parent=1 // pred_fallthru
      _
    // Predicated region
    $region6: #{tpu_custom_call.1} parent=1 // pred_check
      _
    $region7: #{tpu_custom_call.1} parent=1 // pred_check_branch
      %12 = sbr.rel (0) target = $region9
    $region8: #{tpu_custom_call.1} parent=1 // pred_region
      _
    $region9: #{tpu_custom_call.1} parent=1 // pred_fallthru
      _
    // Predicated region
    $region10: #{tpu_custom_call.1} parent=1 // pred_check
      _
    $region11: #{tpu_custom_call.1} parent=1 // pred_check_branch
      %14 = sbr.rel (0) target = $region13
    $region12: #{tpu_custom_call.1} parent=1 // pred_region
      _
    $region13: #{tpu_custom_call.1} parent=1 // pred_fallthru
      _
    %v15 = vld [vmem:[%s0] sm:$0x3]
    %vm16 = vcmask 58368
    %v17 = vsel %vm16, %v15, -inf
    %v18 = vrot.slane %v17, 4
    %v19 = vmax.f32 %v17, %v18
    %v20 = vrot.slane %v19, 2
    %v21 = vmax.f32 %v19, %v20
    %v22 = vrot.slane %v21, 1
    %v23 = vmax.f32 %v21, %v22
    %v24 = vsub.f32 %v15, %v23
    %v25 = vmul.f32 %v24, 1.442695
    %v26 = vpow.pop %v25
    %v27 = vsel %vm16, %v26, 0.0
    %v28 = vrot.slane %v27, 4
    %v29 = vadd.f32 %v27, %v28
    %v30 = vrot.slane %v29, 2
    %v31 = vadd.f32 %v29, %v30
    %v32 = vrot.slane %v31, 1
    %v33 = vadd.f32 %v31, %v32
    %v34 = vlaneseq
    %v35 = vshrl.u32 %v34, 7
    %v36 = vld [vmem:[%s1] sm:$0x1]
    %v37 = vlaneseq
    %v38 = vshrl.u32 %v37, 7
    %v39 = vsub.s32 0, %v38
    %v40 = vrot.slane %v36, %v39
    %vm41 = vcmp.eq.s32.totalorder %v35, %v40
    %v42 = vsel %vm41, %v24, 0.0
    %v43 = vsel %vm16, %v42, 0.0
    %v44 = vrot.slane %v43, 4
    %v45 = vadd.f32 %v43, %v44
    %v46 = vrot.slane %v45, 2
    %v47 = vadd.f32 %v45, %v46
    %v48 = vrot.slane %v47, 1
    %v49 = vadd.f32 %v47, %v48
    %v50 = vsel %vm41, %v26, 0.0
    %v51 = vsel %vm16, %v50, 0.0
    %v52 = vrot.slane %v51, 4
    %v53 = vadd.f32 %v51, %v52
    %v54 = vrot.slane %v53, 2
    %v55 = vadd.f32 %v53, %v54
    %v56 = vrot.slane %v55, 1
    %v57 = vadd.f32 %v55, %v56
    %v58 = vld [vmem:[%s2] sm:$0x3]
    %60 = vset.pattern.permute.xlu0 0
    %61 = vperm.xlu0 %60, %v58
    %v62 = vpop.permute.xlu0 %61
    %v64 = vsel %vm41, %v62, 0.0
    %v65 = vsel %vm16, %v64, 0.0
    %v66 = vrot.slane %v65, 4
    %v67 = vadd.f32 %v65, %v66
    %v68 = vrot.slane %v67, 2
    %v69 = vadd.f32 %v67, %v68
    %v70 = vrot.slane %v69, 1
    %v71 = vadd.f32 %v69, %v70
    %v72 = vlog2.pop %v33
    %v73 = vmul.f32 %v72, 0.6931472
    %v74 = vsub.f32 %v73, %v49
    %v75 = vrcp.pop %v33
    %v76 = vmul.f32 %v57, %v75
    %v77 = vsub.f32 1.0, %v76
    %v78 = vmax.f32 %v77, 0.0
    %v79 = vmin.f32 %v78, 1.0
    %v80 = vmul.f32 %v79, %v79
    %v81 = vmul.f32 %v71, %v80
    %v82 = vmul.f32 %v81, %v74
    %v83 = vlaneseq
    %v84 = vand.u32 %v83, 127
    %s85 = smul.u32 0, 8
    %v86 = vstv %s85
    %v87 = vadd.s32 %v86, %v84
    %vm88 = vcmp.lt.s32.totalorder %v87, 8
    %v89 = vsel %vm88, %v82, 0.0
    %vm90 = vcmask 57344
    %v91 = vsel %vm90, %v89, 0.0
    %92 = vadd.xlane.f32.xlu0 %v91
    %v93 = vpop.xlane.xlu0 %92
    %v94 = vrot.slane %v93, 4
    %v95 = vadd.f32 %v93, %v94
    %v96 = vrot.slane %v95, 2
    %v97 = vadd.f32 %v95, %v96
    %v98 = vrot.slane %v97, 1
    %v99 = vadd.f32 %v97, %v98
    %s100 = vtos %v99
    %v101 = vstv %s100
    %v102 = vadd.f32 %v101, 0.0
    %103 = vst [vmem:[#allocation2] sm:$0xff] %v102
    // Predicated region
    $region14: #{tpu_custom_call.1} parent=1 // pred_check
      _
    $region15: #{tpu_custom_call.1} parent=1 // pred_check_branch
      %105 = sbr.rel (0) target = $region17
    $region16: #{tpu_custom_call.1} parent=1 // pred_region
      %s107 = ssub.s32 128, 128
      %108 = vsyncadd [#allocation3], %s107
      %s110 = sshll.u32 [#allocation2], 4
      %s111 = int_to_ptr.vmem [resolvable:$true] %s110
      %113 = dma.vmem_to_hbm [thread:$0]  %s111, 128, %s3, [#allocation3]
    $region17: #{tpu_custom_call.1} parent=1 // pred_fallthru
      _
    // Predicated region
    $region18: #{tpu_custom_call.1} parent=1 // pred_check
      _
    $region19: #{tpu_custom_call.1} parent=1 // pred_check_branch
      %115 = sbr.rel (0) target = $region21
    $region20: #{tpu_custom_call.1} parent=1 // pred_region
      %116 = dma.done [#allocation3], 128
    $region21: #{tpu_custom_call.1} parent=1 // pred_fallthru
      _
    %117 = vsyncpa [#allocation3], 1

</llo_original>
